<compile_context>
chip_gen: v6e
topology: v6e:2x2x1
jax: 0.10.0
libtpu: 0.0.40
codegen_flags: <defaults>
</compile_context>

<pallas_src>
import math

import jax
import jax.numpy as jnp
from jax.experimental import pallas as pl
from jax.experimental.pallas import tpu as pltpu


_LANE = 128
_BLOCK_BUDGET_BYTES = 4 * 1024 * 1024     # per image block buffer (2 arrays x 2 bufs = 16 MiB)
_VMEM_LIMIT_BYTES = 32 * 1024 * 1024      # explicit scoped VMEM (safe on v5e/v6e/v7x)


def _sublane_rows(itemsize):
    # Full sublane packing for the input dtype: f32 -> 8, bf16 -> 16, int8/fp8 -> 32.
    return max(8, 32 // max(1, int(itemsize)))


def _round_up(x, m):
    return ((x + m - 1) // m) * m


def _plan_exact(total, itemsize):
    """Exact (no-padding) layout of the flattened image pair as (rows, cols).

    Returns (rows, cols, tn, P) or None.
      rows : multiple of the dtype's sublane packing
      cols : total // rows, multiple of 128
      tn   : divisor of cols // P, multiple of 128, block bytes <= budget
      P    : 1 or 2 -- leading 'parallel' grid axis (shards across the two
             TensorCores on v7x; harmless sequential split elsewhere)
    Only accepted if the block is "big" (>= 2 MiB) or already covers all of a
    core's columns; otherwise the padded plan is used (avoids the degenerate
    tn=128 case where fixed per-step overhead dominates).
    """
    sub = _sublane_rows(itemsize)
    if total % (sub * _LANE) != 0:
        return None
    best = None
    for rows_mult in (1, 2, 4, 8):
        rows = sub * rows_mult
        if total % rows != 0:
            continue
        cols = total // rows
        if cols % _LANE != 0:
            continue
        max_tn = max(_LANE, ((_BLOCK_BUDGET_BYTES // (rows * itemsize)) // _LANE) * _LANE)
        for P in (2, 1):
            if cols % P != 0:
                continue
            cpp = cols // P
            if cpp % _LANE != 0:
                continue
            tn, t = 0, _LANE
            lim = min(cpp, max_tn)
            while t <= lim:
                if cpp % t == 0:
                    tn = t
                t += _LANE
            if tn == 0:
                continue
            block_bytes = rows * tn * itemsize
            per_p_bytes = rows * cpp * itemsize
            good = 1 if block_bytes >= min(2 * 1024 * 1024, per_p_bytes) else 0
            score = (good, P, block_bytes)   # prefer: usable blocks, then 2-core split, then size
            if best is None or score > best[0]:
                best = (score, rows, cols, tn, P)
    if best is None or best[0][0] == 0:
        return None
    _, rows, cols, tn, P = best
    return rows, cols, tn, P


def _plan_padded(total, itemsize):
    """Padded layout fallback: always streams in bounded lane-dense blocks.

    Replaces the old single-full-array-block fallback that could exceed the
    scoped VMEM limit (and v7x's 64 MiB physical VMEM) for real image sizes.
    Zero-padding inputs and reconstructions identically adds 0 to the SSE.
    """
    sub = _sublane_rows(itemsize)
    rows = sub
    P = 2
    max_tn = max(_LANE, ((_BLOCK_BUDGET_BYTES // (rows * itemsize)) // _LANE) * _LANE)
    cols_needed = -(-total // rows)
    cpp_needed = max(1, -(-cols_needed // P))
    tn = min(max_tn, _round_up(cpp_needed, _LANE))
    cpp = _round_up(cpp_needed, tn)
    cols = cpp * P
    return rows, cols, tn, P


# ---------------------------------------------------------------------------
# Kernel: tiled SSE reduction (per core) + HSC secret losses -> one stats row
# ---------------------------------------------------------------------------
def _mse_hsc_kernel(x_ref, r_ref, st_ref, sf_ref, c_ref, out_ref, acc_ref):
    k = pl.program_id(1)

    @pl.when(k == 0)
    def _init():
        acc_ref[...] = jnp.zeros_like(acc_ref)

    # Per-step: load tile, VPU square/accumulate, lane reduce into (rows, 1).
    d = x_ref[...].astype(jnp.float32) - r_ref[...].astype(jnp.float32)
    acc_ref[...] += jnp.sum(d * d, axis=1, keepdims=True)

    @pl.when(k == pl.num_programs(1) - 1)
    def _finalize():
        # Sublane reduce of the per-row partial sums -> this core's partial SSE.
        sse = jnp.sum(acc_ref[...], axis=0, keepdims=True)               # (1, 1)

        # HSC losses on the (tiny) secret embeddings; EUP sqrt/exp/log.
        c = c_ref[...].astype(jnp.float32)                               # (1, D)
        dt = st_ref[...].astype(jnp.float32) - c                         # (B, D)
        df = sf_ref[...].astype(jnp.float32) - c
        var_t = jnp.sqrt(jnp.sum(dt * dt, axis=1, keepdims=True) + 1.0) - 1.0   # (B, 1)
        var_f = jnp.sqrt(jnp.sum(df * df, axis=1, keepdims=True) + 1.0) - 1.0
        hsc_neg = -jnp.log(1.0 - jnp.exp(-0.3 * var_f) + 1e-9)
        inv_b = 1.0 / st_ref.shape[0]
        pos_mean = jnp.sum(var_t, axis=0, keepdims=True) * inv_b         # (1, 1)
        neg_mean = jnp.sum(hsc_neg, axis=0, keepdims=True) * inv_b

        # Single merged lane-dense output block:
        #   lane 0 = hsc_pos mean, lane 1 = hsc_neg mean, lane 2 = partial SSE.
        lane = jax.lax.broadcasted_iota(jnp.int32, out_ref.shape, len(out_ref.shape) - 1)
        out_ref[...] = jnp.where(lane == 0, pos_mean,
                       jnp.where(lane == 1, neg_mean,
                       jnp.where(lane == 2, sse, 0.0)))


# ---------------------------------------------------------------------------
# Jitted forward (single pallas dispatch + a tiny scalar combine in XLA)
# ---------------------------------------------------------------------------
@jax.jit
def _hsc_lab_forward_jit(inputs, reconstructions, secrets_true, secrets_false,
                         center, params):
    # params (f32[6]) = [global_step, step0, max_image_weight, ramp, mse_weight, secret_weight]
    b, d_feat = secrets_true.shape
    total = math.prod(inputs.shape)
    itemsize = int(jnp.dtype(inputs.dtype).itemsize)

    plan = _plan_exact(total, itemsize)
    if plan is not None:
        rows, cols, tn, P = plan
        x2d = inputs.reshape(rows, cols)                 # free contiguous reshape
        r2d = reconstructions.reshape(rows, cols)
    else:
        rows, cols, tn, P = _plan_padded(total, itemsize)
        pad = rows * cols - total
        x2d = jnp.pad(inputs.reshape(-1), (0, pad)).reshape(rows, cols)
        r2d = jnp.pad(reconstructions.reshape(-1), (0, pad)).reshape(rows, cols)

    kpp = (cols // P) // tn                              # column tiles per core
    c2d = center.reshape(1, d_feat)

    stats = pl.pallas_call(
        _mse_hsc_kernel,
        out_shape=jax.ShapeDtypeStruct((P, 8, 128), jnp.float32),
        grid=(P, kpp),
        in_specs=[
            pl.BlockSpec((rows, tn), lambda p, k: (0, p * kpp + k)),     # inputs tile
            pl.BlockSpec((rows, tn), lambda p, k: (0, p * kpp + k)),     # reconstructions tile
            pl.BlockSpec((b, d_feat), lambda p, k: (0, 0)),              # secrets_true (resident)
            pl.BlockSpec((b, d_feat), lambda p, k: (0, 0)),              # secrets_false (resident)
            pl.BlockSpec((1, d_feat), lambda p, k: (0, 0)),              # HSC center (resident)
        ],
        out_specs=pl.BlockSpec((None, 8, 128), lambda p, k: (p, 0, 0)),  # per-core stats row
        scratch_shapes=[pltpu.VMEM((rows, 1), jnp.float32)],             # per-core SSE accumulator
        compiler_params=pltpu.CompilerParams(
            dimension_semantics=("parallel", "arbitrary"),
            vmem_limit_bytes=_VMEM_LIMIT_BYTES),
        cost_estimate=pl.CostEstimate(
            flops=int(3 * rows * cols),
            transcendentals=int(4 * b),
            bytes_accessed=int(2 * rows * cols * itemsize + 3 * b * d_feat * 4)),
    )(x2d, r2d, secrets_true, secrets_false, c2d)

    # Trivial scalar combine (a handful of XLA ops on (P,) / scalars).
    pos_mean = stats[0, 0, 0]
    neg_mean = stats[0, 0, 1]
    sse_total = jnp.sum(stats[:, 0, 2])
    mse_mean = sse_total / float(total)

    g_step, step0, max_iw, ramp, mse_w, sec_w = [params[i] for i in range(6)]
    image_weight = 1.0 + jnp.minimum(max_iw, jnp.maximum(0.0, max_iw * (g_step - step0) / ramp))
    # TODO(synk): ciede2000_loss (lab_loss * 0.001 term) has no Pallas equivalent here; omitted.
    image_loss = mse_w * mse_mean
    secret_loss = 0.5 * (pos_mean + neg_mean)
    loss = (image_loss * image_weight + secret_loss * sec_w) / (image_weight + sec_w)
    return loss, mse_mean, pos_mean, neg_mean


# ---------------------------------------------------------------------------
# Module-like wrapper
# ---------------------------------------------------------------------------
class HscLab:
    """JAX/Pallas port of SIREN's `Hsc_Lab` forward (image MSE + HSC secret loss)."""

    def __init__(self, secret_weight=10.0, ramp=10000, max_image_weight_ratio=2.0,
                 mse_weight=1.0):
        self.secret_weight = float(secret_weight)
        self.ramp = float(ramp)
        self.max_image_weight = float(max_image_weight_ratio * secret_weight - 1.0)
        self.mse_weight = float(mse_weight)
        self.ramp_on = False
        self.step0 = 1.0e9
        self.center = None

    def update(self, center):
        self.center = jnp.asarray(center)

    def activate_ramp(self, global_step):
        if not self.ramp_on:
            self.step0 = float(global_step)
            self.ramp_on = True
            print("[TRAINING] Activate ramp for image loss at step ", global_step)

    def forward(self, inputs, reconstructions, secrets_true, secrets_false, global_step):
        params = jnp.array(
            [float(global_step), self.step0, self.max_image_weight, self.ramp,
             self.mse_weight, self.secret_weight], dtype=jnp.float32)
        loss, mse_m, pos_m, neg_m = _hsc_lab_forward_jit(
            inputs, reconstructions, secrets_true, secrets_false, self.center, params)
        # Single batched device->host fetch for the stats dict (no serializing
        # per-scalar float() syncs); `loss` stays a device scalar.
        host = jax.device_get({"loss": loss, "mse_loss": mse_m,
                               "hsc_pos": pos_m, "hsc_neg": neg_m})
        loss_dict = {k: float(v) for k, v in host.items()}
        # TODO(synk): 'lab_loss' (ciede2000_loss) is omitted from loss and loss_dict.
        return loss, loss_dict

    __call__ = forward


# ---------------------------------------------------------------------------
# Main
# ---------------------------------------------------------------------------
if __name__ == "__main__":
    key = jax.random.PRNGKey(0)
    k_in, k_rec, k_st, k_sf, k_c = jax.random.split(key, 5)

    B, C, H, W = 2, 4, 16, 16   # NCHW images
    D = 32                      # secret embedding dim

    inputs = jax.random.normal(k_in, (B, C, H, W), dtype=jnp.float32)
    reconstructions = jax.random.normal(k_rec, (B, C, H, W), dtype=jnp.float32)
    secrets_true = jax.random.normal(k_st, (B, D), dtype=jnp.float32)
    secrets_false = jax.random.normal(k_sf, (B, D), dtype=jnp.float32)
    center = jax.random.normal(k_c, (D,), dtype=jnp.float32)

    model = HscLab()
    model.update(center)
    loss, loss_dict = model.forward(inputs, reconstructions, secrets_true,
                                    secrets_false, global_step=0)
    jax.block_until_ready(loss)

    # Pure-JAX reference of the same forward semantics (lab_loss omitted,
    # ramp inactive -> image_weight = 1).
    mse_ps = jnp.mean((inputs - reconstructions) ** 2, axis=(1, 2, 3))
    var_t = jnp.sqrt(jnp.sum((secrets_true - center[None, :]) ** 2, axis=1) + 1.0) - 1.0
    var_f = jnp.sqrt(jnp.sum((secrets_false - center[None, :]) ** 2, axis=1) + 1.0) - 1.0
    hsc_neg = -jnp.log(1.0 - jnp.exp(-0.3 * var_f) + 1e-9)
    secret_ps = (var_t + hsc_neg) / 2.0
    image_weight = 1.0
    ref_loss = ((1.0 * mse_ps * image_weight + secret_ps * 10.0)
                / (image_weight + 10.0)).mean()

    assert jnp.allclose(loss, ref_loss, rtol=1e-5, atol=1e-5), (float(loss), float(ref_loss))
    assert abs(loss_dict["mse_loss"] - float(mse_ps.mean())) < 1e-5
    assert abs(loss_dict["hsc_pos"] - float(var_t.mean())) < 1e-5
    assert abs(loss_dict["hsc_neg"] - float(hsc_neg.mean())) < 1e-5

    print("KERNEL_OK")
</pallas_src>

<mosaic_0001>
module attributes {stable_mosaic.version = 11 : i64} {
  func.func @_mse_hsc_kernel(%arg0: i32, %arg1: i32, %arg2: memref<8x128xf32, #tpu.memory_space<vmem>>, %arg3: memref<8x128xf32, #tpu.memory_space<vmem>>, %arg4: memref<2x32xf32, #tpu.memory_space<vmem>>, %arg5: memref<2x32xf32, #tpu.memory_space<vmem>>, %arg6: memref<1x32xf32, #tpu.memory_space<vmem>>, %arg7: memref<1x8x128xf32, #tpu.memory_space<vmem>>, %arg8: memref<8x1xf32, #tpu.memory_space<vmem>>) attributes {dimension_semantics = [#tpu.dimension_semantics<parallel>, #tpu.dimension_semantics<arbitrary>], iteration_bounds = array<i64: 2, 1>, scalar_prefetch = 0 : i64, scratch_operands = 1 : i64, tpu.core_type = #tpu.core_type<tc>, window_params = [{transform_indices = @transform_0, window_bounds = array<i64: 8, 128>}, {transform_indices = @transform_1, window_bounds = array<i64: 8, 128>}, {pipeline_mode = #tpu.pipeline_mode<synchronous>, transform_indices = @transform_2, window_bounds = array<i64: 2, 32>}, {pipeline_mode = #tpu.pipeline_mode<synchronous>, transform_indices = @transform_3, window_bounds = array<i64: 2, 32>}, {pipeline_mode = #tpu.pipeline_mode<synchronous>, transform_indices = @transform_4, window_bounds = array<i64: 1, 32>}, {transform_indices = @transform_5, window_bounds = array<i64: 1, 8, 128>}]} {
    %c0_i32 = arith.constant 0 : i32
    %0 = arith.cmpi eq, %arg1, %c0_i32 : i32
    %1 = arith.extui %0 : i1 to i32
    %c0_i32_0 = arith.constant 0 : i32
    %2 = arith.cmpi ne, %1, %c0_i32_0 : i32
    scf.if %2 {
      %cst_10 = arith.constant 0.000000e+00 : f32
      %15 = vector.broadcast %cst_10 : f32 to vector<8x1xf32>
      %c0_11 = arith.constant 0 : index
      %c0_12 = arith.constant 0 : index
      %16 = vector.load %arg8[%c0_11, %c0_12] : memref<8x1xf32, #tpu.memory_space<vmem>>, vector<8x1xf32>
      tpu.vector_store %arg8[%c0_11, %c0_12], %15 {strides = array<i32>} : memref<8x1xf32, #tpu.memory_space<vmem>>, vector<8x1xf32>,
    } else {
    }
    %c0 = arith.constant 0 : index
    %c0_1 = arith.constant 0 : index
    %3 = vector.load %arg2[%c0, %c0_1] : memref<8x128xf32, #tpu.memory_space<vmem>>, vector<8x128xf32>
    %c0_2 = arith.constant 0 : index
    %c0_3 = arith.constant 0 : index
    %4 = vector.load %arg3[%c0_2, %c0_3] : memref<8x128xf32, #tpu.memory_space<vmem>>, vector<8x128xf32>
    %5 = arith.subf %3, %4 : vector<8x128xf32>
    %c0_4 = arith.constant 0 : index
    %c0_5 = arith.constant 0 : index
    %6 = vector.load %arg8[%c0_4, %c0_5] : memref<8x1xf32, #tpu.memory_space<vmem>>, vector<8x1xf32>
    %7 = arith.mulf %5, %5 : vector<8x128xf32>
    %cst = arith.constant dense<0.000000e+00> : vector<8xf32>
    %8 = vector.multi_reduction <add>, %7, %cst [1] : vector<8x128xf32> to vector<8xf32>
    %9 = vector.shape_cast %8 : vector<8xf32> to vector<8x1xf32>
    %10 = arith.addf %6, %9 : vector<8x1xf32>
    %c0_6 = arith.constant 0 : index
    %c0_7 = arith.constant 0 : index
    %11 = vector.load %arg8[%c0_6, %c0_7] : memref<8x1xf32, #tpu.memory_space<vmem>>, vector<8x1xf32>
    tpu.vector_store %arg8[%c0_6, %c0_7], %10 {strides = array<i32>} : memref<8x1xf32, #tpu.memory_space<vmem>>, vector<8x1xf32>,
    %c0_i32_8 = arith.constant 0 : i32
    %12 = arith.cmpi eq, %arg1, %c0_i32_8 : i32
    %13 = arith.extui %12 : i1 to i32
    %c0_i32_9 = arith.constant 0 : i32
    %14 = arith.cmpi ne, %13, %c0_i32_9 : i32
    scf.if %14 {
      %c0_10 = arith.constant 0 : index
      %c0_11 = arith.constant 0 : index
      %15 = vector.load %arg8[%c0_10, %c0_11] : memref<8x1xf32, #tpu.memory_space<vmem>>, vector<8x1xf32>
      %cst_12 = arith.constant dense<0.000000e+00> : vector<1xf32>
      %16 = vector.multi_reduction <add>, %15, %cst_12 [0] : vector<8x1xf32> to vector<1xf32>
      %17 = vector.shape_cast %16 : vector<1xf32> to vector<1x1xf32>
      %c0_13 = arith.constant 0 : index
      %c0_14 = arith.constant 0 : index
      %18 = vector.load %arg6[%c0_13, %c0_14] : memref<1x32xf32, #tpu.memory_space<vmem>>, vector<1x32xf32>
      %c0_15 = arith.constant 0 : index
      %c0_16 = arith.constant 0 : index
      %19 = vector.load %arg4[%c0_15, %c0_16] : memref<2x32xf32, #tpu.memory_space<vmem>>, vector<2x32xf32>
      %20 = vector.broadcast %18 : vector<1x32xf32> to vector<2x32xf32>
      %21 = arith.subf %19, %20 : vector<2x32xf32>
      %c0_17 = arith.constant 0 : index
      %c0_18 = arith.constant 0 : index
      %22 = vector.load %arg5[%c0_17, %c0_18] : memref<2x32xf32, #tpu.memory_space<vmem>>, vector<2x32xf32>
      %23 = vector.broadcast %18 : vector<1x32xf32> to vector<2x32xf32>
      %24 = arith.subf %22, %23 : vector<2x32xf32>
      %25 = arith.mulf %21, %21 : vector<2x32xf32>
      %cst_19 = arith.constant dense<0.000000e+00> : vector<2xf32>
      %26 = vector.multi_reduction <add>, %25, %cst_19 [1] : vector<2x32xf32> to vector<2xf32>
      %27 = vector.shape_cast %26 : vector<2xf32> to vector<2x1xf32>
      %cst_20 = arith.constant 1.000000e+00 : f32
      %28 = vector.broadcast %cst_20 : f32 to vector<2x1xf32>
      %29 = arith.addf %27, %28 : vector<2x1xf32>
      %30 = math.sqrt %29 : vector<2x1xf32>
      %cst_21 = arith.constant 1.000000e+00 : f32
      %31 = vector.broadcast %cst_21 : f32 to vector<2x1xf32>
      %32 = arith.subf %30, %31 : vector<2x1xf32>
      %33 = arith.mulf %24, %24 : vector<2x32xf32>
      %cst_22 = arith.constant dense<0.000000e+00> : vector<2xf32>
      %34 = vector.multi_reduction <add>, %33, %cst_22 [1] : vector<2x32xf32> to vector<2xf32>
      %35 = vector.shape_cast %34 : vector<2xf32> to vector<2x1xf32>
      %cst_23 = arith.constant 1.000000e+00 : f32
      %36 = vector.broadcast %cst_23 : f32 to vector<2x1xf32>
      %37 = arith.addf %35, %36 : vector<2x1xf32>
      %38 = math.sqrt %37 : vector<2x1xf32>
      %cst_24 = arith.constant 1.000000e+00 : f32
      %39 = vector.broadcast %cst_24 : f32 to vector<2x1xf32>
      %40 = arith.subf %38, %39 : vector<2x1xf32>
      %cst_25 = arith.constant -3.000000e-01 : f32
      %41 = vector.broadcast %cst_25 : f32 to vector<2x1xf32>
      %42 = arith.mulf %41, %40 : vector<2x1xf32>
      %43 = math.exp %42 : vector<2x1xf32>
      %cst_26 = arith.constant 1.000000e+00 : f32
      %44 = vector.broadcast %cst_26 : f32 to vector<2x1xf32>
      %45 = arith.subf %44, %43 : vector<2x1xf32>
      %cst_27 = arith.constant 9.99999971E-10 : f32
      %46 = vector.broadcast %cst_27 : f32 to vector<2x1xf32>
      %47 = arith.addf %45, %46 : vector<2x1xf32>
      %48 = math.log %47 : vector<2x1xf32>
      %cst_28 = arith.constant 0.000000e+00 : f32
      %49 = vector.broadcast %cst_28 : f32 to vector<2x1xf32>
      %50 = arith.subf %49, %48 : vector<2x1xf32>
      %cst_29 = arith.constant dense<0.000000e+00> : vector<1xf32>
      %51 = vector.multi_reduction <add>, %32, %cst_29 [0] : vector<2x1xf32> to vector<1xf32>
      %52 = vector.shape_cast %51 : vector<1xf32> to vector<1x1xf32>
      %cst_30 = arith.constant 5.000000e-01 : f32
      %53 = vector.broadcast %cst_30 : f32 to vector<1x1xf32>
      %54 = arith.mulf %52, %53 : vector<1x1xf32>
      %cst_31 = arith.constant dense<0.000000e+00> : vector<1xf32>
      %55 = vector.multi_reduction <add>, %50, %cst_31 [0] : vector<2x1xf32> to vector<1xf32>
      %56 = vector.shape_cast %55 : vector<1xf32> to vector<1x1xf32>
      %cst_32 = arith.constant 5.000000e-01 : f32
      %57 = vector.broadcast %cst_32 : f32 to vector<1x1xf32>
      %58 = arith.mulf %56, %57 : vector<1x1xf32>
      %59 = tpu.iota {dimensions = array<i32: 1>} : vector<8x128xi32>
      %c0_i32_33 = arith.constant 0 : i32
      %60 = vector.broadcast %c0_i32_33 : i32 to vector<8x128xi32>
      %61 = arith.cmpi eq, %59, %60 : vector<8x128xi32>
      %c1_i32 = arith.constant 1 : i32
      %62 = vector.broadcast %c1_i32 : i32 to vector<8x128xi32>
      %63 = arith.cmpi eq, %59, %62 : vector<8x128xi32>
      %c2_i32 = arith.constant 2 : i32
      %64 = vector.broadcast %c2_i32 : i32 to vector<8x128xi32>
      %65 = arith.cmpi eq, %59, %64 : vector<8x128xi32>
      %cst_34 = arith.constant 0.000000e+00 : f32
      %66 = vector.shape_cast %17 : vector<1x1xf32> to vector<1x1xf32>
      %67 = vector.broadcast %66 : vector<1x1xf32> to vector<8x128xf32>
      %68 = vector.broadcast %cst_34 : f32 to vector<8x128xf32>
      %69 = arith.select %65, %67, %68 : vector<8x128xi1>, vector<8x128xf32>
      %70 = vector.shape_cast %58 : vector<1x1xf32> to vector<1x1xf32>
      %71 = vector.broadcast %70 : vector<1x1xf32> to vector<8x128xf32>
      %72 = arith.select %63, %71, %69 : vector<8x128xi1>, vector<8x128xf32>
      %73 = vector.shape_cast %54 : vector<1x1xf32> to vector<1x1xf32>
      %74 = vector.broadcast %73 : vector<1x1xf32> to vector<8x128xf32>
      %75 = arith.select %61, %74, %72 : vector<8x128xi1>, vector<8x128xf32>
      %c0_35 = arith.constant 0 : index
      %c0_36 = arith.constant 0 : index
      %c0_37 = arith.constant 0 : index
      %76 = vector.load %arg7[%c0_35, %c0_36, %c0_37] : memref<1x8x128xf32, #tpu.memory_space<vmem>>, vector<1x8x128xf32>
      %77 = vector.shape_cast %76 : vector<1x8x128xf32> to vector<8x128xf32>
      %78 = vector.shape_cast %75 : vector<8x128xf32> to vector<1x8x128xf32>
      tpu.vector_store %arg7[%c0_35, %c0_36, %c0_37], %78 {strides = array<i32>} : memref<1x8x128xf32, #tpu.memory_space<vmem>>, vector<1x8x128xf32>,
    } else {
    }
    return
  }
  func.func @transform_0(%arg0: i32, %arg1: i32) -> (i32, i32) {
    %c1_i32 = arith.constant 1 : i32
    %0 = arith.muli %arg0, %c1_i32 : i32
    %1 = arith.addi %0, %arg1 : i32
    %c0_i32 = arith.constant 0 : i32
    %c0_i32_0 = arith.constant 0 : i32
    return %c0_i32, %1 : i32, i32
  }
  func.func @transform_1(%arg0: i32, %arg1: i32) -> (i32, i32) {
    %c1_i32 = arith.constant 1 : i32
    %0 = arith.muli %arg0, %c1_i32 : i32
    %1 = arith.addi %0, %arg1 : i32
    %c0_i32 = arith.constant 0 : i32
    %c0_i32_0 = arith.constant 0 : i32
    return %c0_i32, %1 : i32, i32
  }
  func.func @transform_2(%arg0: i32, %arg1: i32) -> (i32, i32) {
    %c0_i32 = arith.constant 0 : i32
    %c0_i32_0 = arith.constant 0 : i32
    %c0_i32_1 = arith.constant 0 : i32
    return %c0_i32, %c0_i32_0 : i32, i32
  }
  func.func @transform_3(%arg0: i32, %arg1: i32) -> (i32, i32) {
    %c0_i32 = arith.constant 0 : i32
    %c0_i32_0 = arith.constant 0 : i32
    %c0_i32_1 = arith.constant 0 : i32
    return %c0_i32, %c0_i32_0 : i32, i32
  }
  func.func @transform_4(%arg0: i32, %arg1: i32) -> (i32, i32) {
    %c0_i32 = arith.constant 0 : i32
    %c0_i32_0 = arith.constant 0 : i32
    %c0_i32_1 = arith.constant 0 : i32
    return %c0_i32, %c0_i32_0 : i32, i32
  }
  func.func @transform_5(%arg0: i32, %arg1: i32) -> (i32, i32, i32) {
    %c0_i32 = arith.constant 0 : i32
    %c0_i32_0 = arith.constant 0 : i32
    %c0_i32_1 = arith.constant 0 : i32
    return %arg0, %c0_i32, %c0_i32_0 : i32, i32, i32
  }
}

</mosaic_0001>

<llo_original>
// kernel: _hsc_lab_forward_jit.1
$region0: #{_hsc_lab_forward_jit.1}
  #allocation0 [shape = 'u32[]', space=smem, size = 0x4, offset = 0x4, fixed_abs, tag = 'smem constant byte address 0x4 - core index']
  #allocation1 [shape = 'u32[144,128]{1,0:T(1,128)}', space=vmem, size = 0x12000, scoped, tag = 'internal scratch']
  #allocation2 [shape = 'f32[8,1]{1,0:T(8,128)}', space=vmem, size = 0x1000, scoped, tag = 'scratch operand']
  %s0 = inlined_call_operand.vmem [shape: f32[8,256], index: 0, kind: input, shape index: {}]
  %s1 = inlined_call_operand.vmem [shape: f32[8,256], index: 1, kind: input, shape index: {}]
  %s2 = inlined_call_operand.vmem [shape: f32[2,32], index: 2, kind: input, shape index: {}]
  %s3 = inlined_call_operand.vmem [shape: f32[2,32], index: 3, kind: input, shape index: {}]
  %s4 = inlined_call_operand.vmem [shape: f32[1,32], index: 4, kind: input, shape index: {}]
  %s5 = inlined_call_operand.vmem [shape: f32[2,8,128], index: 5, kind: output, shape index: {}]
  %s6 = sld [smem:[#allocation0]]
  $region61: #{_hsc_lab_forward_jit.1} parent=0
    _
  %s8 = ssub.s32 1, %s6
  %s9 = scalar_select 0, %s8, %s6
  loop: start=0, step=1, limit=4
  $region2: #{_hsc_lab_forward_jit.1} parent=0 // loop_pre_header
    _
  $region3: #{_hsc_lab_forward_jit.1} parent=0 // loop_header
    %s11 = sphi 0, %s15
    %p12 = scmp.ge.s32.totalorder %s11, 4
    %s18 = sphi 0, %s30
    %s19 = sphi 0, %s26
    %s20 = sphi 0, %s18
    %s21 = sphi 0, %s19
    %s22 = sphi 0, %s20
    %s23 = sphi 0, %s21
    %s35 = sphi 0, %s37
    %s38 = sphi 0, %s35
    %s39 = sphi 0, %s38
    %s55 = sphi 0, %s39
    %s63 = sphi 0, %s65
    %s66 = sphi 0, %s63
    %s67 = sphi 0, %s66
    %s83 = sphi 0, %s67
    %s87 = sphi 0, %s87
    %s89 = sphi 0, %s87
    %s90 = sphi 0, %s89
    %s104 = sphi 0, %s90
    %s108 = sphi 0, %s108
    %s110 = sphi 0, %s108
    %s111 = sphi 0, %s110
    %s125 = sphi 0, %s111
    %s129 = sphi 0, %s129
    %s131 = sphi 0, %s129
    %s132 = sphi 0, %s131
    %s146 = sphi 0, %s132
    %s152 = sphi 0, %s154
    %s155 = sphi 0, %s152
    %s156 = sphi 0, %s155
    %s172 = sphi 0, %s156
  $region4: #{_hsc_lab_forward_jit.1} parent=0 // loop_header_branch
    %14 = sbr.rel (%p12) target = $region8
  $region5: #{_hsc_lab_forward_jit.1} parent=0 // loop_body
    %s16 = ssub.s32 %s11, 1
    %s17 = ssub.s32 %s11, 2
    %s24 = sadd.s32 1, %s19
    %p25 = scmp.ge.s32.totalorder %s24, 1
    %s26 = scalar_select %p25, 0, %s24
    %s27 = sadd.s32 1, %s18
    %s28 = scalar_select %p25, %s27, %s18
    %p29 = scmp.ge.s32.totalorder %s28, 2
    %s30 = scalar_select %p29, 0, %s28
    %s31 = sadd.s32 %s18, %s19
    %s32 = sadd.s32 %s30, %s26
    %s33 = ssub.s32 %s31, %s32
    %p34 = scmp.eq.s32.totalorder %s33, 0
    %s36 = sadd.s32 %s35, 1
    %s37 = scalar_select %p34, %s35, %s36
    %p40 = pneg %p34
    %p41 = scmp.eq.s32.totalorder %s11, 1
    %p42 = por %p40, %p41
    %p43 = scmp.ne.s32.totalorder %s35, %s38
    %p44 = scmp.eq.s32.totalorder %s11, 0
    %p45 = por %p43, %p44
    %p46 = scmp.ne.s32.totalorder %s35, %s38
    %p47 = scmp.eq.s32.totalorder %s16, 1
    %p48 = por %p46, %p47
    %p49 = scmp.ne.s32.totalorder %s38, %s39
    %p50 = scmp.eq.s32.totalorder %s16, 0
    %p51 = por %p49, %p50
    %p52 = scmp.ne.s32.totalorder %s38, %s39
    %p53 = scmp.eq.s32.totalorder %s17, 1
    %p54 = por %p52, %p53
    %p56 = scmp.ne.s32.totalorder %s39, %s55
    %p57 = scmp.eq.s32.totalorder %s17, 0
    %p58 = por %p56, %p57
    %s59 = sadd.s32 %s18, %s19
    %s60 = sadd.s32 %s30, %s26
    %s61 = ssub.s32 %s59, %s60
    %p62 = scmp.eq.s32.totalorder %s61, 0
    %s64 = sadd.s32 %s63, 1
    %s65 = scalar_select %p62, %s63, %s64
    %p68 = pneg %p62
    %p69 = scmp.eq.s32.totalorder %s11, 1
    %p70 = por %p68, %p69
    %p71 = scmp.ne.s32.totalorder %s63, %s66
    %p72 = scmp.eq.s32.totalorder %s11, 0
    %p73 = por %p71, %p72
    %p74 = scmp.ne.s32.totalorder %s63, %s66
    %p75 = scmp.eq.s32.totalorder %s16, 1
    %p76 = por %p74, %p75
    %p77 = scmp.ne.s32.totalorder %s66, %s67
    %p78 = scmp.eq.s32.totalorder %s16, 0
    %p79 = por %p77, %p78
    %p80 = scmp.ne.s32.totalorder %s66, %s67
    %p81 = scmp.eq.s32.totalorder %s17, 1
    %p82 = por %p80, %p81
    %p84 = scmp.ne.s32.totalorder %s67, %s83
    %p85 = scmp.eq.s32.totalorder %s17, 0
    %p86 = por %p84, %p85
    %s88 = sadd.s32 %s87, 1
    %p91 = scmp.eq.s32.totalorder %s11, 1
    %p92 = scmp.ne.s32.totalorder %s87, %s89
    %p93 = scmp.eq.s32.totalorder %s11, 0
    %p94 = por %p92, %p93
    %p95 = scmp.ne.s32.totalorder %s87, %s89
    %p96 = scmp.eq.s32.totalorder %s16, 1
    %p97 = por %p95, %p96
    %p98 = scmp.ne.s32.totalorder %s89, %s90
    %p99 = scmp.eq.s32.totalorder %s16, 0
    %p100 = por %p98, %p99
    %p101 = scmp.ne.s32.totalorder %s89, %s90
    %p102 = scmp.eq.s32.totalorder %s17, 1
    %p103 = por %p101, %p102
    %p105 = scmp.ne.s32.totalorder %s90, %s104
    %p106 = scmp.eq.s32.totalorder %s17, 0
    %p107 = por %p105, %p106
    %s109 = sadd.s32 %s108, 1
    %p112 = scmp.eq.s32.totalorder %s11, 1
    %p113 = scmp.ne.s32.totalorder %s108, %s110
    %p114 = scmp.eq.s32.totalorder %s11, 0
    %p115 = por %p113, %p114
    %p116 = scmp.ne.s32.totalorder %s108, %s110
    %p117 = scmp.eq.s32.totalorder %s16, 1
    %p118 = por %p116, %p117
    %p119 = scmp.ne.s32.totalorder %s110, %s111
    %p120 = scmp.eq.s32.totalorder %s16, 0
    %p121 = por %p119, %p120
    %p122 = scmp.ne.s32.totalorder %s110, %s111
    %p123 = scmp.eq.s32.totalorder %s17, 1
    %p124 = por %p122, %p123
    %p126 = scmp.ne.s32.totalorder %s111, %s125
    %p127 = scmp.eq.s32.totalorder %s17, 0
    %p128 = por %p126, %p127
    %s130 = sadd.s32 %s129, 1
    %p133 = scmp.eq.s32.totalorder %s11, 1
    %p134 = scmp.ne.s32.totalorder %s129, %s131
    %p135 = scmp.eq.s32.totalorder %s11, 0
    %p136 = por %p134, %p135
    %p137 = scmp.ne.s32.totalorder %s129, %s131
    %p138 = scmp.eq.s32.totalorder %s16, 1
    %p139 = por %p137, %p138
    %p140 = scmp.ne.s32.totalorder %s131, %s132
    %p141 = scmp.eq.s32.totalorder %s16, 0
    %p142 = por %p140, %p141
    %p143 = scmp.ne.s32.totalorder %s131, %s132
    %p144 = scmp.eq.s32.totalorder %s17, 1
    %p145 = por %p143, %p144
    %p147 = scmp.ne.s32.totalorder %s132, %s146
    %p148 = scmp.eq.s32.totalorder %s17, 0
    %p149 = por %p147, %p148
    %s150 = ssub.s32 %s18, %s30
    %p151 = scmp.eq.s32.totalorder %s150, 0
    %s153 = sadd.s32 %s152, 1
    %s154 = scalar_select %p151, %s152, %s153
    %p157 = pneg %p151
    %p158 = scmp.eq.s32.totalorder %s11, 1
    %p159 = por %p157, %p158
    %p160 = scmp.ne.s32.totalorder %s152, %s155
    %p161 = scmp.eq.s32.totalorder %s11, 0
    %p162 = por %p160, %p161
    %p163 = scmp.ne.s32.totalorder %s152, %s155
    %p164 = scmp.eq.s32.totalorder %s16, 1
    %p165 = por %p163, %p164
    %p166 = scmp.ne.s32.totalorder %s155, %s156
    %p167 = scmp.eq.s32.totalorder %s16, 0
    %p168 = por %p166, %p167
    %p169 = scmp.ne.s32.totalorder %s155, %s156
    %p170 = scmp.eq.s32.totalorder %s17, 1
    %p171 = por %p169, %p170
    %p173 = scmp.ne.s32.totalorder %s156, %s172
    %p174 = scmp.eq.s32.totalorder %s17, 0
    %p175 = por %p173, %p174
    %p176 = scmp.le.s32.totalorder 1, %s11
    %p177 = scmp.lt.s32.totalorder %s11, 3
    %p178 = pnand %p176, %p177
    %p179 = pneg %p178
    // Predicated region
    $region9: #{_hsc_lab_forward_jit.1} parent=5 // pred_check
      _
    $region10: #{_hsc_lab_forward_jit.1} parent=5 // pred_check_branch
      %181 = sbr.rel (%p178) target = $region12
    $region11: #{_hsc_lab_forward_jit.1} parent=5 // pred_region
      %s182 = ssub.s32 %s11, 1
      // Predicated region
      $region13: #{_hsc_lab_forward_jit.1} parent=11 // pred_check
        %p183 = pneg %p100
      $region14: #{_hsc_lab_forward_jit.1} parent=11 // pred_check_branch
        %185 = sbr.rel (%p183) target = $region16
      $region15: #{_hsc_lab_forward_jit.1} parent=11 // pred_region
        _
      $region16: #{_hsc_lab_forward_jit.1} parent=11 // pred_fallthru
        _
      // Predicated region
      $region17: #{_hsc_lab_forward_jit.1} parent=11 // pred_check
        %p186 = pneg %p121
      $region18: #{_hsc_lab_forward_jit.1} parent=11 // pred_check_branch
        %188 = sbr.rel (%p186) target = $region20
      $region19: #{_hsc_lab_forward_jit.1} parent=11 // pred_region
        _
      $region20: #{_hsc_lab_forward_jit.1} parent=11 // pred_fallthru
        _
      // Predicated region
      $region21: #{_hsc_lab_forward_jit.1} parent=11 // pred_check
        %p189 = pneg %p142
      $region22: #{_hsc_lab_forward_jit.1} parent=11 // pred_check_branch
        %191 = sbr.rel (%p189) target = $region24
      $region23: #{_hsc_lab_forward_jit.1} parent=11 // pred_region
        _
      $region24: #{_hsc_lab_forward_jit.1} parent=11 // pred_fallthru
        _
    $region12: #{_hsc_lab_forward_jit.1} parent=5 // pred_fallthru
      _
    %p192 = scmp.lt.s32.totalorder %s11, 2
    // Predicated region
    $region25: #{_hsc_lab_forward_jit.1} parent=5 // pred_check
      %p193 = pneg %p192
    $region26: #{_hsc_lab_forward_jit.1} parent=5 // pred_check_branch
      %195 = sbr.rel (%p193) target = $region28
    $region27: #{_hsc_lab_forward_jit.1} parent=5 // pred_region
      // Predicated region
      $region29: #{_hsc_lab_forward_jit.1} parent=27 // pred_check
        %p196 = pneg %p45
      $region30: #{_hsc_lab_forward_jit.1} parent=27 // pred_check_branch
        %198 = sbr.rel (%p196) target = $region32
      $region31: #{_hsc_lab_forward_jit.1} parent=27 // pred_region
        %s199 = sadd.s32 %s18, %s19
        %p200 = scmp.lt.s32.totalorder %s199, 1
        %s201 = scalar_select %p200, %s199, 1
        %s202 = smul.addr %s201, 8
        %s203 = scalar_lea.vmem %s0, %s202
        %s204 = sadd.s32 %s18, %s19
      $region32: #{_hsc_lab_forward_jit.1} parent=27 // pred_fallthru
        _
      // Predicated region
      $region33: #{_hsc_lab_forward_jit.1} parent=27 // pred_check
        %p205 = pneg %p73
      $region34: #{_hsc_lab_forward_jit.1} parent=27 // pred_check_branch
        %207 = sbr.rel (%p205) target = $region36
      $region35: #{_hsc_lab_forward_jit.1} parent=27 // pred_region
        %s208 = sadd.s32 %s18, %s19
        %p209 = scmp.lt.s32.totalorder %s208, 1
        %s210 = scalar_select %p209, %s208, 1
        %s211 = smul.addr %s210, 8
        %s212 = scalar_lea.vmem %s1, %s211
        %s213 = sadd.s32 %s18, %s19
      $region36: #{_hsc_lab_forward_jit.1} parent=27 // pred_fallthru
        _
    $region28: #{_hsc_lab_forward_jit.1} parent=5 // pred_fallthru
      _
    %p214 = scmp.le.s32.totalorder 1, %s11
    %p215 = scmp.lt.s32.totalorder %s11, 3
    %p216 = pnand %p214, %p215
    %p217 = pneg %p216
    // Predicated region
    $region37: #{_hsc_lab_forward_jit.1} parent=5 // pred_check
      _
    $region38: #{_hsc_lab_forward_jit.1} parent=5 // pred_check_branch
      %219 = sbr.rel (%p216) target = $region40
    $region39: #{_hsc_lab_forward_jit.1} parent=5 // pred_region
      %s220 = ssub.s32 %s11, 1
      %s221 = sadd.s32 %s20, %s21
      %p222 = scmp.lt.s32.totalorder %s221, 1
      %s223 = scalar_select %p222, %s221, 1
      %s224 = smul.addr %s223, 8
      %s225 = scalar_lea.vmem %s0, %s224
      %p226 = pneg %p51
      %p227 = pneg %p48
      %s228 = sadd.s32 %s20, %s21
      %p229 = scmp.lt.s32.totalorder %s228, 1
      %s230 = scalar_select %p229, %s228, 1
      %s231 = smul.addr %s230, 8
      %s232 = scalar_lea.vmem %s1, %s231
      %p233 = pneg %p79
      %p234 = pneg %p76
      %p235 = pneg %p100
      %p236 = pneg %p97
      %p237 = pneg %p121
      %p238 = pneg %p118
      %p239 = pneg %p142
      %p240 = pneg %p139
      %p241 = pneg %p168
      %p242 = pneg %p165
      %p243 = scmp.lt.s32.totalorder %s20, 1
      %s244 = scalar_select %p243, %s20, 1
      %s245 = smul.addr %s244, 8
      %s246 = scalar_lea.vmem %s5, %s245
      %s247 = sadd.s32 %s20, %s21
      %p248 = scmp.lt.s32.totalorder %s247, 1
      %s249 = scalar_select %p248, %s247, 1
      %s250 = smul.addr %s249, 8
      %s251 = scalar_lea.vmem %s0, %s250
      %s252 = sadd.s32 %s20, %s21
      %s253 = sadd.s32 %s20, %s21
      %p254 = scmp.lt.s32.totalorder %s253, 1
      %s255 = scalar_select %p254, %s253, 1
      %s256 = smul.addr %s255, 8
      %s257 = scalar_lea.vmem %s1, %s256
      %s258 = sadd.s32 %s20, %s21
      %p259 = scmp.lt.s32.totalorder %s20, 1
      %s260 = scalar_select %p259, %s20, 1
      %s261 = smul.addr %s260, 8
      %s262 = scalar_lea.vmem %s5, %s261
      %p263 = scmp.eq.s32.totalorder %s21, 0
      // Predicated region
      $region41: #{_hsc_lab_forward_jit.1} parent=39 // pred_check
        %p264 = pneg %p263
      $region42: #{_hsc_lab_forward_jit.1} parent=39 // pred_check_branch
        %266 = sbr.rel (%p264) target = $region44
      $region43: #{_hsc_lab_forward_jit.1} parent=39 // pred_region
        %vm267 = vcmask 7168
        %268 = vst.msk [vmem:[#allocation2] sm:$0xff] %vm267, 0.0
      $region44: #{_hsc_lab_forward_jit.1} parent=39 // pred_fallthru
        _
      %v269 = vld [vmem:[%s251] sm:$0xff]
      %v270 = vld [vmem:[%s257] sm:$0xff]
      %v271 = vsub.f32 %v269, %v270
      %v272 = vld [vmem:[#allocation2] sm:$0xff]
      %v273 = vmul.f32 %v271, %v271
      %274 = vadd.xlane.f32.xlu0 %v273
      %v275 = vpop.xlane.xlu0 %274
      %v276 = vadd.f32 %v272, %v275
      %vm277 = vcmask 7168
      %278 = vst.msk [vmem:[#allocation2] sm:$0xff] %vm277, %v276
      // Predicated region
      $region45: #{_hsc_lab_forward_jit.1} parent=39 // pred_check
        %p279 = pneg %p263
      $region46: #{_hsc_lab_forward_jit.1} parent=39 // pred_check_branch
        %281 = sbr.rel (%p279) target = $region48
      $region47: #{_hsc_lab_forward_jit.1} parent=39 // pred_region
        %v282 = vld [vmem:[#allocation2] sm:$0xff]
        %v283 = vsel %vm277, %v282, 0.0
        %v284 = vrot.slane %v283, 4
        %v285 = vadd.f32 %v283, %v284
        %v286 = vrot.slane %v285, 2
        %v287 = vadd.f32 %v285, %v286
        %v288 = vrot.slane %v287, 1
        %v289 = vadd.f32 %v287, %v288
        %v290 = vld [vmem:[%s4] sm:$0x1]
        %v291 = vld [vmem:[%s2] sm:$0x3]
        %v293 = vlaneseq
        %v294 = vshrl.u32 %v293, 7
        %v295 = vsub.s32 0, %v294
        %v296 = vrot.slane %v290, %v295
        %v298 = vsub.f32 %v291, %v296
        %v299 = vld [vmem:[%s3] sm:$0x3]
        %v300 = vsub.f32 %v299, %v296
        %v301 = vmul.f32 %v298, %v298
        %vm302 = vcmask 254976
        %v303 = vsel %vm302, %v301, 0.0
        %304 = vadd.xlane.f32.xlu0 %v303
        %v305 = vpop.xlane.xlu0 %304
        %v306 = vadd.f32 %v305, 1.0
        %v307 = vrsqrt.pop %v306
        %v308 = vmul.f32 %v306, %v307
        %vm309 = vcmp.eq.f32.partialorder %v306, inf
        %v310 = vsel %vm309, %v306, %v308
        %vm311 = vcmp.eq.f32.partialorder %v306, 0.0
        %v312 = vand.u32 %v306, 2147483648
        %v313 = vsel %vm311, %v312, %v310
        %v314 = vsub.f32 %v313, 1.0
        %v315 = vmul.f32 %v300, %v300
        %v316 = vsel %vm302, %v315, 0.0
        %317 = vadd.xlane.f32.xlu0 %v316
        %v318 = vpop.xlane.xlu0 %317
        %v319 = vadd.f32 %v318, 1.0
        %v320 = vrsqrt.pop %v319
        %v321 = vmul.f32 %v319, %v320
        %vm322 = vcmp.eq.f32.partialorder %v319, inf
        %v323 = vsel %vm322, %v319, %v321
        %vm324 = vcmp.eq.f32.partialorder %v319, 0.0
        %v325 = vand.u32 %v319, 2147483648
        %v326 = vsel %vm324, %v325, %v323
        %v327 = vsub.f32 %v326, 1.0
        %v328 = vmul.f32 %v327, -0.3
        %v329 = vmul.f32 %v328, 1.442695
        %v330 = vpow.pop %v329
        %v331 = vsub.f32 1.0, %v330
        %v332 = vadd.f32 %v331, 1e-09
        %v333 = vlog2.pop %v332
        %v334 = vmul.f32 %v333, 0.6931472
        %v335 = vsub.f32 0.0, %v334
        %vm336 = vcmask 1041408
        %v337 = vsel %vm336, %v314, 0.0
        %v338 = vrot.slane %v337, 4
        %v339 = vadd.f32 %v337, %v338
        %v340 = vrot.slane %v339, 2
        %v341 = vadd.f32 %v339, %v340
        %v342 = vrot.slane %v341, 1
        %v343 = vadd.f32 %v341, %v342
        %v344 = vmul.f32 %v343, 0.5
        %v345 = vsel %vm336, %v335, 0.0
        %v346 = vrot.slane %v345, 4
        %v347 = vadd.f32 %v345, %v346
        %v348 = vrot.slane %v347, 2
        %v349 = vadd.f32 %v347, %v348
        %v350 = vrot.slane %v349, 1
        %v351 = vadd.f32 %v349, %v350
        %v352 = vmul.f32 %v351, 0.5
        %v353 = vlaneseq
        %v354 = vand.u32 %v353, 127
        %vm355 = vcmp.eq.s32.totalorder %v354, 0
        %vm356 = vcmp.eq.s32.totalorder %v354, 1
        %vm357 = vcmp.eq.s32.totalorder %v354, 2
        %359 = vset.pattern.permute.xlu0 0
        %360 = vperm.xlu0 %359, %v289
        %v361 = vpop.permute.xlu0 %360
        %v363 = vsel %vm357, %v361, 0.0
        %v364 = vsel %vm356, %v352, %v363
        %v365 = vsel %vm355, %v344, %v364
        %366 = vst [vmem:[%s262] sm:$0xff] %v365
      $region48: #{_hsc_lab_forward_jit.1} parent=39 // pred_fallthru
        _
      %p367 = scmp.lt.s32.totalorder %s20, 1
      %s368 = scalar_select %p367, %s20, 1
      %s369 = smul.addr %s368, 8
      %s370 = scalar_lea.vmem %s5, %s369
      // Predicated region
      $region49: #{_hsc_lab_forward_jit.1} parent=39 // pred_check
        %p371 = pneg %p165
      $region50: #{_hsc_lab_forward_jit.1} parent=39 // pred_check_branch
        %373 = sbr.rel (%p371) target = $region52
      $region51: #{_hsc_lab_forward_jit.1} parent=39 // pred_region
        _
      $region52: #{_hsc_lab_forward_jit.1} parent=39 // pred_fallthru
        _
    $region40: #{_hsc_lab_forward_jit.1} parent=5 // pred_fallthru
      _
    %p374 = scmp.le.s32.totalorder 2, %s11
    // Predicated region
    $region53: #{_hsc_lab_forward_jit.1} parent=5 // pred_check
      %p375 = pneg %p374
    $region54: #{_hsc_lab_forward_jit.1} parent=5 // pred_check_branch
      %377 = sbr.rel (%p375) target = $region56
    $region55: #{_hsc_lab_forward_jit.1} parent=5 // pred_region
      %s378 = ssub.s32 %s11, 2
      // Predicated region
      $region57: #{_hsc_lab_forward_jit.1} parent=55 // pred_check
        %p379 = pneg %p171
      $region58: #{_hsc_lab_forward_jit.1} parent=55 // pred_check_branch
        %381 = sbr.rel (%p379) target = $region60
      $region59: #{_hsc_lab_forward_jit.1} parent=55 // pred_region
        %p382 = scmp.lt.s32.totalorder %s22, 1
        %s383 = scalar_select %p382, %s22, 1
        %s384 = smul.addr %s383, 8
        %s385 = scalar_lea.vmem %s5, %s384
      $region60: #{_hsc_lab_forward_jit.1} parent=55 // pred_fallthru
        _
    $region56: #{_hsc_lab_forward_jit.1} parent=5 // pred_fallthru
      _
  $region6: #{_hsc_lab_forward_jit.1} parent=0 // loop_footer
    %s15 = sadd.s32 1, %s11
  $region7: #{_hsc_lab_forward_jit.1} parent=0 // loop_footer_branch
    %10 = sbr.rel target = $region3
  $region8: #{_hsc_lab_forward_jit.1} parent=0 // loop_exit
    _

</llo_original>
